<compile_context>
chip_gen: v5e
topology: v5e:2x2
jax: 0.10.0
libtpu: 0.0.40
codegen_flags: <defaults>
</compile_context>

<pallas_src>
import jax
import jax.numpy as jnp
from jax.experimental import pallas as pl
from jax.experimental.pallas import tpu as pltpu

# Module constants (from the PyTorch script)
BATCH_SIZE = 1
HIDDEN_SIZE = 5
INPUT_SIZE = 5
NUM_CLASSES = 5
NUM_LAYERS = 1
SEQ_LEN = 1

# The PyTorch model has no output projection: `out.view(-1, num_classes)` only
# works because NUM_CLASSES == HIDDEN_SIZE. Keep that assumption explicit.
assert NUM_CLASSES == HIDDEN_SIZE


def _rnn_kernel(x_ref, h0_ref, params_ref, hidden_ref, out_ref, z_ref):
    """Fused single-layer Elman RNN (tanh) over SEQ_LEN timesteps.

    x_ref:      (B, T, I)        VMEM
    h0_ref:     (L, B, H)        VMEM (L == 1)
    params_ref: (I+H+1, H)       VMEM  rows [0:I+H) = [W_ih^T ; W_hh^T],
                                       row  I+H     = b_ih + b_hh
    hidden_ref: (L, B, H)        output (HBM buffer aliased with h0)
    out_ref:    (B*T, H)         output (== out.view(-1, num_classes))
    z_ref:      (B, I+H)         VMEM scratch holding [x_t | h_{t-1}]
    """
    w = params_ref[0:INPUT_SIZE + HIDDEN_SIZE, :]                       # (I+H, H)
    b = params_ref[INPUT_SIZE + HIDDEN_SIZE:INPUT_SIZE + HIDDEN_SIZE + 1, :]  # (1, H)

    h = h0_ref[0]                                                       # (B, H)

    # SEQ_LEN is a small static constant -> fully unrolled Python loop.
    for t in range(SEQ_LEN):
        # Build z = [x_t | h] in VMEM so a single fused dot covers both
        # the input and the recurrent projection.
        z_ref[:, 0:INPUT_SIZE] = x_ref[:, t, :]
        z_ref[:, INPUT_SIZE:INPUT_SIZE + HIDDEN_SIZE] = h
        pre = jnp.dot(z_ref[...], w, preferred_element_type=jnp.float32) + b
        h = jnp.tanh(pre)
        out_ref[t * BATCH_SIZE:(t + 1) * BATCH_SIZE, :] = h.astype(out_ref.dtype)

    hidden_ref[0] = h.astype(hidden_ref.dtype)


@jax.jit
def rnn_forward(hidden, x, w_ih, w_hh, b_ih, b_hh):
    """Mirrors Model.forward(hidden, x) -> (hidden, out.view(-1, num_classes))."""
    x = x.reshape(BATCH_SIZE, SEQ_LEN, INPUT_SIZE).astype(jnp.float32)
    hidden = hidden.astype(jnp.float32)

    # Pack all parameters into one small array -> a single HBM->VMEM DMA.
    params = jnp.concatenate(
        [w_ih.T.astype(jnp.float32),                                    # (I, H)
         w_hh.T.astype(jnp.float32),                                    # (H, H)
         (b_ih + b_hh).reshape(1, HIDDEN_SIZE).astype(jnp.float32)],    # (1, H)
        axis=0)                                                         # (I+H+1, H)

    vmem = pl.BlockSpec(memory_space=pltpu.MemorySpace.VMEM)

    flops = 2 * BATCH_SIZE * SEQ_LEN * (INPUT_SIZE + HIDDEN_SIZE) * HIDDEN_SIZE
    bytes_accessed = 4 * (BATCH_SIZE * SEQ_LEN * INPUT_SIZE
                          + 2 * NUM_LAYERS * BATCH_SIZE * HIDDEN_SIZE
                          + (INPUT_SIZE + HIDDEN_SIZE + 1) * HIDDEN_SIZE
                          + BATCH_SIZE * SEQ_LEN * NUM_CLASSES)

    hidden_out, out = pl.pallas_call(
        _rnn_kernel,
        out_shape=(
            jax.ShapeDtypeStruct((NUM_LAYERS, BATCH_SIZE, HIDDEN_SIZE), jnp.float32),
            jax.ShapeDtypeStruct((BATCH_SIZE * SEQ_LEN, NUM_CLASSES), jnp.float32),
        ),
        in_specs=[vmem, vmem, vmem],
        out_specs=(vmem, vmem),
        scratch_shapes=[pltpu.VMEM((BATCH_SIZE, INPUT_SIZE + HIDDEN_SIZE), jnp.float32)],
        # Reuse the hidden-state input buffer for the hidden-state output.
        input_output_aliases={1: 0},
        cost_estimate=pl.CostEstimate(
            flops=flops,
            transcendentals=BATCH_SIZE * SEQ_LEN * HIDDEN_SIZE,
            bytes_accessed=bytes_accessed),
    )(x, hidden, params)
    return hidden_out, out


def _reference(hidden, x, w_ih, w_hh, b_ih, b_hh):
    """Pure-JAX reference matching torch.nn.RNN (tanh, batch_first, 1 layer)."""
    x = x.reshape(BATCH_SIZE, SEQ_LEN, INPUT_SIZE)
    h = hidden[0]
    outs = []
    for t in range(SEQ_LEN):
        h = jnp.tanh(x[:, t, :] @ w_ih.T + b_ih + h @ w_hh.T + b_hh)
        outs.append(h)
    out = jnp.stack(outs, axis=1).reshape(-1, NUM_CLASSES)
    return h[None, ...], out


if __name__ == "__main__":
    key = jax.random.PRNGKey(0)
    k_x, k_wih, k_whh, k_bih, k_bhh = jax.random.split(key, 5)

    # PyTorch nn.RNN default init: U(-1/sqrt(H), 1/sqrt(H))
    bound = 1.0 / (HIDDEN_SIZE ** 0.5)
    w_ih = jax.random.uniform(k_wih, (HIDDEN_SIZE, INPUT_SIZE), jnp.float32, -bound, bound)
    w_hh = jax.random.uniform(k_whh, (HIDDEN_SIZE, HIDDEN_SIZE), jnp.float32, -bound, bound)
    b_ih = jax.random.uniform(k_bih, (HIDDEN_SIZE,), jnp.float32, -bound, bound)
    b_hh = jax.random.uniform(k_bhh, (HIDDEN_SIZE,), jnp.float32, -bound, bound)

    # init_hidden(): zeros(num_layers, batch_size, hidden_size)
    hidden0 = jnp.zeros((NUM_LAYERS, BATCH_SIZE, HIDDEN_SIZE), jnp.float32)
    # input of shape (batch, seq, input)
    x = jax.random.normal(k_x, (BATCH_SIZE, SEQ_LEN, INPUT_SIZE), jnp.float32)

    hidden_out, out = rnn_forward(hidden0, x, w_ih, w_hh, b_ih, b_hh)
    jax.block_until_ready((hidden_out, out))

    # Cross-check against pure-JAX reference
    ref_hidden, ref_out = _reference(hidden0, x, w_ih, w_hh, b_ih, b_hh)
    assert hidden_out.shape == (NUM_LAYERS, BATCH_SIZE, HIDDEN_SIZE)
    assert out.shape == (BATCH_SIZE * SEQ_LEN, NUM_CLASSES)
    assert jnp.allclose(hidden_out, ref_hidden, atol=1e-5, rtol=1e-5)
    assert jnp.allclose(out, ref_out, atol=1e-5, rtol=1e-5)

    print("KERNEL_OK")
</pallas_src>

<mosaic_0001>
module attributes {stable_mosaic.version = 11 : i64} {
  func.func @_rnn_kernel(%arg0: memref<1x1x5xf32, #tpu.memory_space<vmem>>, %arg1: memref<1x1x5xf32, #tpu.memory_space<vmem>>, %arg2: memref<11x5xf32, #tpu.memory_space<vmem>>, %arg3: memref<1x1x5xf32, #tpu.memory_space<vmem>>, %arg4: memref<1x5xf32, #tpu.memory_space<vmem>>, %arg5: memref<1x10xf32, #tpu.memory_space<vmem>>) attributes {dimension_semantics = [], scalar_prefetch = 0 : i64, scratch_operands = 1 : i64, tpu.core_type = #tpu.core_type<tc>} {
    %c0 = arith.constant 0 : index
    %c0_0 = arith.constant 0 : index
    %0 = vector.load %arg2[%c0, %c0_0] : memref<11x5xf32, #tpu.memory_space<vmem>>, vector<10x5xf32>
    %c10 = arith.constant 10 : index
    %c0_1 = arith.constant 0 : index
    %1 = vector.load %arg2[%c10, %c0_1] : memref<11x5xf32, #tpu.memory_space<vmem>>, vector<1x5xf32>
    %c0_2 = arith.constant 0 : index
    %c0_3 = arith.constant 0 : index
    %c0_4 = arith.constant 0 : index
    %2 = vector.load %arg1[%c0_2, %c0_3, %c0_4] : memref<1x1x5xf32, #tpu.memory_space<vmem>>, vector<1x1x5xf32>
    %3 = vector.shape_cast %2 : vector<1x1x5xf32> to vector<1x5xf32>
    %c0_5 = arith.constant 0 : index
    %c0_6 = arith.constant 0 : index
    %c0_7 = arith.constant 0 : index
    %4 = vector.load %arg0[%c0_5, %c0_6, %c0_7] : memref<1x1x5xf32, #tpu.memory_space<vmem>>, vector<1x1x5xf32>
    %5 = vector.shape_cast %4 : vector<1x1x5xf32> to vector<1x5xf32>
    %c0_8 = arith.constant 0 : index
    %c0_9 = arith.constant 0 : index
    %6 = vector.load %arg5[%c0_8, %c0_9] : memref<1x10xf32, #tpu.memory_space<vmem>>, vector<1x5xf32>
    tpu.vector_store %arg5[%c0_8, %c0_9], %5 {strides = array<i32>} : memref<1x10xf32, #tpu.memory_space<vmem>>, vector<1x5xf32>,
    %c0_10 = arith.constant 0 : index
    %c5 = arith.constant 5 : index
    %7 = vector.load %arg5[%c0_10, %c5] : memref<1x10xf32, #tpu.memory_space<vmem>>, vector<1x5xf32>
    tpu.vector_store %arg5[%c0_10, %c5], %3 {strides = array<i32>} : memref<1x10xf32, #tpu.memory_space<vmem>>, vector<1x5xf32>,
    %c0_11 = arith.constant 0 : index
    %c0_12 = arith.constant 0 : index
    %8 = vector.load %arg5[%c0_11, %c0_12] : memref<1x10xf32, #tpu.memory_space<vmem>>, vector<1x10xf32>
    %cst = arith.constant dense<0.000000e+00> : vector<1x5xf32>
    %9 = tpu.matmul %8, %0, %cst {dimension_numbers = #tpu.dot_dimension_numbers<[1], [0], [0], [1], [0, 0, 1, 1], [], []>} : vector<1x10xf32>, vector<10x5xf32>, vector<1x5xf32> -> vector<1x5xf32>
    %10 = arith.addf %9, %1 : vector<1x5xf32>
    %11 = math.tanh %10 : vector<1x5xf32>
    %c0_13 = arith.constant 0 : index
    %c0_14 = arith.constant 0 : index
    %12 = vector.load %arg4[%c0_13, %c0_14] : memref<1x5xf32, #tpu.memory_space<vmem>>, vector<1x5xf32>
    tpu.vector_store %arg4[%c0_13, %c0_14], %11 {strides = array<i32>} : memref<1x5xf32, #tpu.memory_space<vmem>>, vector<1x5xf32>,
    %c0_15 = arith.constant 0 : index
    %c0_16 = arith.constant 0 : index
    %c0_17 = arith.constant 0 : index
    %13 = vector.load %arg3[%c0_15, %c0_16, %c0_17] : memref<1x1x5xf32, #tpu.memory_space<vmem>>, vector<1x1x5xf32>
    %14 = vector.shape_cast %13 : vector<1x1x5xf32> to vector<1x5xf32>
    %15 = vector.shape_cast %11 : vector<1x5xf32> to vector<1x1x5xf32>
    tpu.vector_store %arg3[%c0_15, %c0_16, %c0_17], %15 {strides = array<i32>} : memref<1x1x5xf32, #tpu.memory_space<vmem>>, vector<1x1x5xf32>,
    return
  }
}

</mosaic_0001>

<llo_original>
// kernel: rnn_forward.1
$region0: #{rnn_forward.1}
  #allocation0 [shape = 'u32[]', space=smem, size = 0x4, offset = 0x4, fixed_abs, tag = 'smem constant byte address 0x4 - core index']
  #allocation1 [shape = 'u32[72,128]{1,0:T(1,128)}', space=vmem, size = 0x9000, scoped, tag = 'internal scratch']
  #allocation2 [shape = 'f32[1,10]{1,0:T(1,128)}', space=vmem, size = 0x200, scoped, tag = 'scratch operand']
  %s0 = inlined_call_operand.vmem [shape: f32[1,1,5], index: 0, kind: input, shape index: {}]
  %s1 = inlined_call_operand.hbm [shape: f32[1,1,5], index: 1, kind: input, shape index: {}, may-alias: {1,3}]
  %s2 = inlined_call_operand.vmem [shape: f32[11,5], index: 2, kind: input, shape index: {}]
  %s3 = inlined_call_operand.hbm [shape: f32[1,1,5], index: 3, kind: output, shape index: {0}, may-alias: {1,3}]
  %s4 = inlined_call_operand.hbm [shape: f32[1,5], index: 4, kind: output, shape index: {1}]
  %5 = xla_tuple %s3, %s4
  %s6 = sld [smem:[#allocation0]]
  $region34: #{rnn_forward.1} parent=0
    _
  %s8 = ssub.s32 1, %s6
  %s9 = scalar_select 0, %s8, %s6
  $region1: #{rnn_forward.1} parent=0
    #allocation3 [shape = 'u8[512]{0}', space=vmem, size = 0x400, scoped, tag = 'input window, operand 1, single buffered']
    #allocation4 [shape = 's32[1]{0}', space=sflag, size = 0x4, scoped, tag = 'scoped memory for rnn_forward.1']
    #allocation5 [shape = 's32[1]{0}', space=sflag, size = 0x4, scoped, tag = 'scoped memory for rnn_forward.1']
    #allocation6 [shape = 'u8[512]{0}', space=vmem, size = 0x400, scoped, tag = 'output window, operand 0, single buffered']
    #allocation7 [shape = 'u8[512]{0}', space=vmem, size = 0x400, scoped, tag = 'output window, operand 1, single buffered']
    #allocation8 [shape = 's32[1]{0}', space=sflag, size = 0x4, scoped, tag = 'scoped memory for rnn_forward.1']
    %10 = vsyncpa [#allocation4], 0
    %11 = vsyncpa [#allocation5], 0
    %12 = vsyncpa [#allocation8], 0
    // Predicated region
    $region2: #{rnn_forward.1} parent=1 // pred_check
      _
    $region3: #{rnn_forward.1} parent=1 // pred_check_branch
      %14 = sbr.rel (0) target = $region5
    $region4: #{rnn_forward.1} parent=1 // pred_region
      _
    $region5: #{rnn_forward.1} parent=1 // pred_fallthru
      _
    // Predicated region
    $region6: #{rnn_forward.1} parent=1 // pred_check
      _
    $region7: #{rnn_forward.1} parent=1 // pred_check_branch
      %16 = sbr.rel (0) target = $region9
    $region8: #{rnn_forward.1} parent=1 // pred_region
      %18 = vsyncadd [#allocation4], 0
      %s20 = sshll.u32 %s1, 4
      %s21 = int_to_ptr.hbm [resolvable:$true] %s20
      %s22 = sshll.u32 [#allocation3], 4
      %s23 = int_to_ptr.vmem [resolvable:$true] %s22
      %25 = dma.hbm_to_vmem [thread:$0]  %s21, 16, %s23, [#allocation4]
    $region9: #{rnn_forward.1} parent=1 // pred_fallthru
      _
    // Predicated region
    $region10: #{rnn_forward.1} parent=1 // pred_check
      _
    $region11: #{rnn_forward.1} parent=1 // pred_check_branch
      %27 = sbr.rel (0) target = $region13
    $region12: #{rnn_forward.1} parent=1 // pred_region
      _
    $region13: #{rnn_forward.1} parent=1 // pred_fallthru
      _
    // Predicated region
    $region14: #{rnn_forward.1} parent=1 // pred_check
      _
    $region15: #{rnn_forward.1} parent=1 // pred_check_branch
      %29 = sbr.rel (0) target = $region17
    $region16: #{rnn_forward.1} parent=1 // pred_region
      %31 = dma.done [#allocation4], 16
    $region17: #{rnn_forward.1} parent=1 // pred_fallthru
      _
    %v32 = vld [vmem:[%s2] sm:$0xff]
    %v33 = vld [vmem:[%s2 + $0x8] sm:$0x3]
    %v34 = vld [vmem:[%s2 + $0xa] sm:$0x1]
    %v35 = vld [vmem:[#allocation3] sm:$0x1]
    %v36 = vld [vmem:[%s0] sm:$0x1]
    %vm37 = vcmask 32768
    %38 = vst.msk [vmem:[#allocation2] sm:$0x1] %vm37, %v36
    %v40 = vperm.slane %v35, 0
    %41 = vrot.lane.b32.xlu0 %v40, 5
    %v42 = vpop.permute.xlu0 %41
    %vm44 = vcmask 73768
    %45 = vst.msk [vmem:[#allocation2] sm:$0x1] %vm44, %v42
    %v46 = vld [vmem:[#allocation2] sm:$0x1]
    %vm47 = vcmask 80896
    %v49 = vsel %vm47, %v46, 0
    %vm51 = vcmask 1041408
    %v53 = vsel %vm51, %v33, 0
    %55 = vmatpush.msra.mxu0 0.0
    %56 = vmatpush.msra.mxu0 0.0
    %57 = vmatpush.msra.mxu0 0.0
    %58 = vmatpush.msra.mxu0 0.0
    %59 = vmatpush.msra.mxu0 0.0
    %60 = vmatpush.msra.mxu0 0.0
    %61 = vmatpush.msra.mxu0 0.0
    %62 = vmatpush.msra.mxu0 0.0
    %63 = vmatpush.msra.mxu0 0.0
    %64 = vmatpush.msra.mxu0 0.0
    %65 = vmatpush.msra.mxu0 0.0
    %66 = vmatpush.msra.mxu0 0.0
    %67 = vmatpush.msra.mxu0 0.0
    %68 = vmatpush.msra.mxu0 0.0
    %69 = vmatpush.msra.mxu0 %v53
    %70 = vmatpush.msra.mxu0 %v32
    %71 = vmatmul.f32.gmra.mxu0 %v49
    %v72 = vpop.f32.mrf.mxu0
    %v73 = vadd.f32 %v34, %v72
    %74 = vdwg.mxu0
    %v75 = vtanh.pop %v73
    %76 = vst.msk [vmem:[#allocation7] sm:$0x1] %vm37, %v75
    %77 = vst.msk [vmem:[#allocation6] sm:$0x1] %vm37, %v75
    // Predicated region
    $region18: #{rnn_forward.1} parent=1 // pred_check
      _
    $region19: #{rnn_forward.1} parent=1 // pred_check_branch
      %79 = sbr.rel (0) target = $region21
    $region20: #{rnn_forward.1} parent=1 // pred_region
      %81 = vsyncadd [#allocation5], 0
      %s83 = sshll.u32 [#allocation6], 4
      %s84 = int_to_ptr.vmem [resolvable:$true] %s83
      %s85 = sshll.u32 %s3, 4
      %s86 = int_to_ptr.hbm [resolvable:$true] %s85
      %88 = dma.vmem_to_hbm [thread:$0]  %s84, 16, %s86, [#allocation5]
    $region21: #{rnn_forward.1} parent=1 // pred_fallthru
      _
    // Predicated region
    $region22: #{rnn_forward.1} parent=1 // pred_check
      _
    $region23: #{rnn_forward.1} parent=1 // pred_check_branch
      %90 = sbr.rel (0) target = $region25
    $region24: #{rnn_forward.1} parent=1 // pred_region
      %92 = vsyncadd [#allocation8], 0
      %s94 = sshll.u32 [#allocation7], 4
      %s95 = int_to_ptr.vmem [resolvable:$true] %s94
      %s96 = sshll.u32 %s4, 4
      %s97 = int_to_ptr.hbm [resolvable:$true] %s96
      %99 = dma.vmem_to_hbm [thread:$0]  %s95, 16, %s97, [#allocation8]
    $region25: #{rnn_forward.1} parent=1 // pred_fallthru
      _
    // Predicated region
    $region26: #{rnn_forward.1} parent=1 // pred_check
      _
    $region27: #{rnn_forward.1} parent=1 // pred_check_branch
      %101 = sbr.rel (0) target = $region29
    $region28: #{rnn_forward.1} parent=1 // pred_region
      %103 = dma.done [#allocation5], 16
    $region29: #{rnn_forward.1} parent=1 // pred_fallthru
      _
    // Predicated region
    $region30: #{rnn_forward.1} parent=1 // pred_check
      _
    $region31: #{rnn_forward.1} parent=1 // pred_check_branch
      %105 = sbr.rel (0) target = $region33
    $region32: #{rnn_forward.1} parent=1 // pred_region
      %107 = dma.done [#allocation8], 16
    $region33: #{rnn_forward.1} parent=1 // pred_fallthru
      _
    %108 = vsyncpa [#allocation4], 1
    %109 = vsyncpa [#allocation5], 1
    %110 = vsyncpa [#allocation8], 1

</llo_original>
